<compile_context>
chip_gen: v6e
topology: v6e:2x2x1
jax: 0.10.0
libtpu: 0.0.40
codegen_flags: <defaults>
</compile_context>

<pallas_src>
import functools

import jax
import jax.numpy as jnp
from jax.experimental import pallas as pl
from jax.experimental.pallas import tpu as pltpu


def _round_up(x, m):
    return ((x + m - 1) // m) * m


def gatu2d_kernel(x_ref, w_ref, b_ref, o_ref, *, chunk, use_mxu):
    """x_ref: (1, C, TS); w_ref: (2, C, C); b_ref: (2, C, 1); o_ref: (1, C, TS)."""
    C = o_ref.shape[1]
    ts = o_ref.shape[2]
    n_chunks = ts // chunk

    # Weights / bias are grid-resident (constant index_map); load once per tile.
    w1 = w_ref[0]                                   # (C, C), I/O dtype
    w2 = w_ref[1]
    b1 = b_ref[0].astype(jnp.float32)               # (C, 1)
    b2 = b_ref[1].astype(jnp.float32)
    if not use_mxu:
        w1f = w1.astype(jnp.float32)
        w2f = w2.astype(jnp.float32)

    def process(xc):
        """xc: (C, chunk) input slab -> (C, chunk) activated output."""
        if use_mxu:
            # MXU contraction in the I/O dtype (bf16-native on v6e/v7x),
            # f32 accumulation + epilogue.
            y1 = jnp.dot(w1, xc, preferred_element_type=jnp.float32) + b1
            y2 = jnp.dot(w2, xc, preferred_element_type=jnp.float32) + b2
        else:
            # Tiny-C path (C <= 8): unrolled VPU FMAs; the two (C, chunk) f32
            # accumulators are only a handful of vregs, so no spills.
            xf = xc.astype(jnp.float32)
            y1 = jnp.broadcast_to(b1, (C, chunk))
            y2 = jnp.broadcast_to(b2, (C, chunk))
            for c in range(C):                      # static unroll, C <= 8
                xrow = xf[c:c + 1, :]               # (1, chunk)
                y1 = y1 + w1f[:, c:c + 1] * xrow
                y2 = y2 + w2f[:, c:c + 1] * xrow
        # sigmoid(y2) == 0.5*(tanh(0.5*y2)+1): one cheap EUP op per gate
        # (avoids XLA logistic's precise divide; matters on v7x w/ bf16 I/O).
        gate = 0.5 * (jnp.tanh(0.5 * y2) + 1.0)
        return (jnp.tanh(y1) * gate).astype(o_ref.dtype)

    if n_chunks == 1:
        o_ref[0] = process(x_ref[0])
    else:
        def do_chunk(off):
            o_ref[0, :, pl.ds(off, chunk)] = process(x_ref[0, :, pl.ds(off, chunk)])

        if n_chunks <= 8:
            for ci in range(n_chunks):              # static, aligned offsets
                do_chunk(ci * chunk)
        else:
            def body(i, carry):
                do_chunk(pl.multiple_of(i * chunk, chunk))
                return carry
            jax.lax.fori_loop(0, n_chunks, body, 0, unroll=False)


def gatu2d_pallas(x_nchw, w1, b1, w2, b2, *, target_tile_bytes=2 << 20,
                  use_mxu=None):
    """x_nchw: (N, C, H, W); w1/w2: (C_out, C_in) squeezed 1x1-conv weights;
    b1/b2: (C_out,).  Returns tanh(conv1(x)) * sigmoid(conv2(x)), NCHW."""
    N, C, H, W = x_nchw.shape
    S = H * W
    dtype = x_nchw.dtype
    itemsize = jnp.dtype(dtype).itemsize

    # NCHW -> (N, C, S): contiguous reshape, no HBM transpose; spatial on lanes.
    x3 = x_nchw.reshape(N, C, S)

    # Stacked (2, C, C) weights / (2, C, 1) f32 bias.  Weights follow the I/O
    # dtype so bf16 inputs use the bf16-native MXU; bias & epilogue stay f32.
    w_dtype = dtype if dtype == jnp.bfloat16 else jnp.float32
    w_st = jnp.stack([jnp.asarray(w1), jnp.asarray(w2)]).astype(w_dtype)
    b_st = jnp.stack([jnp.asarray(b1), jnp.asarray(b2)]).reshape(2, C, 1)
    b_st = b_st.astype(jnp.float32)

    # Spatial tile sized by bytes (~target_tile_bytes of input per block),
    # multiple of 128 lanes.  Ragged S handled by Pallas partial blocks:
    # stale tail lanes only feed per-element math and their OOB writes are
    # dropped -- no wrapper-side pad / slice round-trips through HBM.
    CHUNK = 512
    ts = max(target_tile_bytes // (C * itemsize), 128)
    ts = _round_up(min(ts, S), 128)
    if N == 1 and S > 2 * CHUNK:
        # Keep >= 2 grid steps so both v7x TensorCores get work at batch=1.
        ts = min(ts, _round_up(pl.cdiv(S, 2), 128))
    if ts > CHUNK:
        ts = _round_up(ts, CHUNK)
        chunk = CHUNK          # epilogue sub-tile: keeps live f32 gates in vregs
    else:
        chunk = ts
    n_s = pl.cdiv(S, ts)
    grid = (N, n_s)

    if use_mxu is None:
        use_mxu = C > 8        # only truly tiny contractions win on the VPU

    # VMEM: double-buffered in/out tiles + resident weights + chunk temps.
    tile_bytes = C * ts * itemsize
    vmem_limit = (4 * tile_bytes + 4 * C * C * 4 + 6 * C * chunk * 4
                  + (4 << 20))
    vmem_limit = int(min(max(vmem_limit, 16 << 20), 48 << 20))  # v7x-safe cap

    cost = pl.CostEstimate(
        flops=4 * C * C * N * S,
        transcendentals=2 * N * C * S,
        bytes_accessed=(2 * N * C * S * itemsize
                        + 2 * C * C * jnp.dtype(w_dtype).itemsize),
    )

    out3 = pl.pallas_call(
        functools.partial(gatu2d_kernel, chunk=chunk, use_mxu=use_mxu),
        out_shape=jax.ShapeDtypeStruct((N, C, S), dtype),
        grid_spec=pltpu.PrefetchScalarGridSpec(
            num_scalar_prefetch=0,
            grid=grid,
            in_specs=[
                pl.BlockSpec((1, C, ts), lambda n, s: (n, 0, s)),   # x tile
                pl.BlockSpec((2, C, C), lambda n, s: (0, 0, 0)),    # weights
                pl.BlockSpec((2, C, 1), lambda n, s: (0, 0, 0)),    # biases
            ],
            out_specs=pl.BlockSpec((1, C, ts), lambda n, s: (n, 0, s)),
        ),
        compiler_params=pltpu.CompilerParams(
            dimension_semantics=("parallel", "parallel"),
            vmem_limit_bytes=vmem_limit,
        ),
        cost_estimate=cost,
    )(x3, w_st, b_st)

    return out3.reshape(N, C, H, W)


def gatu2d_ref(x_nchw, w1, b1, w2, b2):
    # Pure-JAX reference (same math as the PyTorch module).
    y1 = jnp.einsum('nchw,oc->nohw', x_nchw, w1) + b1[None, :, None, None]
    y2 = jnp.einsum('nchw,oc->nohw', x_nchw, w2) + b2[None, :, None, None]
    return jnp.tanh(y1) * jax.nn.sigmoid(y2)


def _rand_params(key, C):
    k_w1, k_b1, k_w2, k_b2 = jax.random.split(key, 4)
    # nn.init.normal_(weight/bias, 0.0, 0.05); conv weight (C,C,1,1) squeezed.
    w1 = 0.05 * jax.random.normal(k_w1, (C, C), dtype=jnp.float32)
    b1 = 0.05 * jax.random.normal(k_b1, (C,), dtype=jnp.float32)
    w2 = 0.05 * jax.random.normal(k_w2, (C, C), dtype=jnp.float32)
    b2 = 0.05 * jax.random.normal(k_b2, (C,), dtype=jnp.float32)
    return w1, b1, w2, b2


if __name__ == "__main__":
    key = jax.random.PRNGKey(0)
    k_x, k_p = jax.random.split(key)

    # Demo shape implied by the module: batch=2, channels=4, 16x16 spatial.
    N, C, H, W = 2, 4, 16, 16
    x = jax.random.normal(k_x, (N, C, H, W), dtype=jnp.float32)
    w1, b1, w2, b2 = _rand_params(k_p, C)

    out = jax.block_until_ready(gatu2d_pallas(x, w1, b1, w2, b2))
    ref = gatu2d_ref(x, w1, b1, w2, b2)
    assert out.shape == (N, C, H, W)
    assert jnp.allclose(out, ref, atol=1e-5, rtol=1e-5)

    # Ragged spatial extent: partial last block (no wrapper pad), VPU branch.
    x_r = jax.random.normal(jax.random.PRNGKey(1), (1, C, 5, 7), jnp.float32)
    out_r = jax.block_until_ready(gatu2d_pallas(x_r, w1, b1, w2, b2))
    ref_r = gatu2d_ref(x_r, w1, b1, w2, b2)
    assert out_r.shape == x_r.shape
    assert jnp.allclose(out_r, ref_r, atol=1e-5, rtol=1e-5)

    # Multi-tile grid + multi-chunk epilogue + ragged tail (VPU branch).
    x_m = jax.random.normal(jax.random.PRNGKey(7), (1, C, 40, 40), jnp.float32)
    out_m = jax.block_until_ready(gatu2d_pallas(x_m, w1, b1, w2, b2))
    ref_m = gatu2d_ref(x_m, w1, b1, w2, b2)
    assert jnp.allclose(out_m, ref_m, atol=1e-5, rtol=1e-5)

    # Many-chunk epilogue -> exercises the in-kernel fori_loop path.
    x_f = jax.random.normal(jax.random.PRNGKey(8), (1, C, 96, 96), jnp.float32)
    out_f = jax.block_until_ready(gatu2d_pallas(x_f, w1, b1, w2, b2))
    ref_f = gatu2d_ref(x_f, w1, b1, w2, b2)
    assert jnp.allclose(out_f, ref_f, atol=1e-5, rtol=1e-5)

    # Mid channel count with ragged spatial extent: MXU branch + partial block.
    C1 = 16
    x_p = jax.random.normal(jax.random.PRNGKey(9), (1, C1, 13, 11), jnp.float32)
    w1p, b1p, w2p, b2p = _rand_params(jax.random.PRNGKey(10), C1)
    out_p = jax.block_until_ready(gatu2d_pallas(x_p, w1p, b1p, w2p, b2p))
    ref_p = gatu2d_ref(x_p, w1p, b1p, w2p, b2p)
    assert jnp.allclose(out_p, ref_p, atol=1e-3, rtol=1e-3)

    # Larger channel count: MXU branch.  f32 MXU matmul precision can differ
    # slightly from the XLA einsum -> looser tolerance.
    C2 = 128
    xb = jax.random.normal(jax.random.PRNGKey(2), (1, C2, 8, 16), jnp.float32)
    w1b, b1b, w2b, b2b = _rand_params(jax.random.PRNGKey(3), C2)
    out_b = jax.block_until_ready(gatu2d_pallas(xb, w1b, b1b, w2b, b2b))
    ref_b = gatu2d_ref(xb, w1b, b1b, w2b, b2b)
    assert jnp.allclose(out_b, ref_b, atol=5e-3, rtol=5e-3)

    print("KERNEL_OK")
</pallas_src>

<mosaic_0001>
module attributes {stable_mosaic.version = 11 : i64} {
  func.func @gatu2d_kernel(%arg0: i32, %arg1: i32, %arg2: memref<1x4x256xf32, #tpu.memory_space<vmem>>, %arg3: memref<2x4x4xf32, #tpu.memory_space<vmem>>, %arg4: memref<2x4x1xf32, #tpu.memory_space<vmem>>, %arg5: memref<1x4x256xf32, #tpu.memory_space<vmem>>) attributes {dimension_semantics = [#tpu.dimension_semantics<parallel>, #tpu.dimension_semantics<parallel>], iteration_bounds = array<i64: 2, 1>, scalar_prefetch = 0 : i64, scratch_operands = 0 : i64, tpu.core_type = #tpu.core_type<tc>, window_params = [{transform_indices = @transform_0, window_bounds = array<i64: 1, 4, 256>}, {pipeline_mode = #tpu.pipeline_mode<synchronous>, transform_indices = @transform_1, window_bounds = array<i64: 2, 4, 4>}, {pipeline_mode = #tpu.pipeline_mode<synchronous>, transform_indices = @transform_2, window_bounds = array<i64: 2, 4, 1>}, {transform_indices = @transform_3, window_bounds = array<i64: 1, 4, 256>}]} {
    %c0 = arith.constant 0 : index
    %c0_0 = arith.constant 0 : index
    %c0_1 = arith.constant 0 : index
    %0 = vector.load %arg3[%c0, %c0_0, %c0_1] : memref<2x4x4xf32, #tpu.memory_space<vmem>>, vector<1x4x4xf32>
    %1 = vector.shape_cast %0 : vector<1x4x4xf32> to vector<4x4xf32>
    %c1 = arith.constant 1 : index
    %c0_2 = arith.constant 0 : index
    %c0_3 = arith.constant 0 : index
    %2 = vector.load %arg3[%c1, %c0_2, %c0_3] : memref<2x4x4xf32, #tpu.memory_space<vmem>>, vector<1x4x4xf32>
    %3 = vector.shape_cast %2 : vector<1x4x4xf32> to vector<4x4xf32>
    %c0_4 = arith.constant 0 : index
    %c0_5 = arith.constant 0 : index
    %c0_6 = arith.constant 0 : index
    %4 = vector.load %arg4[%c0_4, %c0_5, %c0_6] : memref<2x4x1xf32, #tpu.memory_space<vmem>>, vector<1x4x1xf32>
    %5 = vector.shape_cast %4 : vector<1x4x1xf32> to vector<4x1xf32>
    %c1_7 = arith.constant 1 : index
    %c0_8 = arith.constant 0 : index
    %c0_9 = arith.constant 0 : index
    %6 = vector.load %arg4[%c1_7, %c0_8, %c0_9] : memref<2x4x1xf32, #tpu.memory_space<vmem>>, vector<1x4x1xf32>
    %7 = vector.shape_cast %6 : vector<1x4x1xf32> to vector<4x1xf32>
    %c0_10 = arith.constant 0 : index
    %c0_11 = arith.constant 0 : index
    %c0_12 = arith.constant 0 : index
    %8 = vector.load %arg2[%c0_10, %c0_11, %c0_12] : memref<1x4x256xf32, #tpu.memory_space<vmem>>, vector<1x4x256xf32>
    %9 = vector.shape_cast %8 : vector<1x4x256xf32> to vector<4x256xf32>
    %10 = vector.shape_cast %5 : vector<4x1xf32> to vector<4x1xf32>
    %11 = vector.broadcast %10 : vector<4x1xf32> to vector<4x256xf32>
    %12 = vector.shape_cast %7 : vector<4x1xf32> to vector<4x1xf32>
    %13 = vector.broadcast %12 : vector<4x1xf32> to vector<4x256xf32>
    %14 = vector.extract_strided_slice %9 {offsets = [0, 0], sizes = [1, 256], strides = [1, 1]} : vector<4x256xf32> to vector<1x256xf32>
    %15 = vector.extract_strided_slice %1 {offsets = [0, 0], sizes = [4, 1], strides = [1, 1]} : vector<4x4xf32> to vector<4x1xf32>
    %16 = vector.broadcast %15 : vector<4x1xf32> to vector<4x256xf32>
    %17 = vector.broadcast %14 : vector<1x256xf32> to vector<4x256xf32>
    %18 = arith.mulf %16, %17 : vector<4x256xf32>
    %19 = arith.addf %11, %18 : vector<4x256xf32>
    %20 = vector.extract_strided_slice %3 {offsets = [0, 0], sizes = [4, 1], strides = [1, 1]} : vector<4x4xf32> to vector<4x1xf32>
    %21 = vector.broadcast %20 : vector<4x1xf32> to vector<4x256xf32>
    %22 = vector.broadcast %14 : vector<1x256xf32> to vector<4x256xf32>
    %23 = arith.mulf %21, %22 : vector<4x256xf32>
    %24 = arith.addf %13, %23 : vector<4x256xf32>
    %25 = vector.extract_strided_slice %9 {offsets = [1, 0], sizes = [1, 256], strides = [1, 1]} : vector<4x256xf32> to vector<1x256xf32>
    %26 = vector.extract_strided_slice %1 {offsets = [0, 1], sizes = [4, 1], strides = [1, 1]} : vector<4x4xf32> to vector<4x1xf32>
    %27 = vector.broadcast %26 : vector<4x1xf32> to vector<4x256xf32>
    %28 = vector.broadcast %25 : vector<1x256xf32> to vector<4x256xf32>
    %29 = arith.mulf %27, %28 : vector<4x256xf32>
    %30 = arith.addf %19, %29 : vector<4x256xf32>
    %31 = vector.extract_strided_slice %3 {offsets = [0, 1], sizes = [4, 1], strides = [1, 1]} : vector<4x4xf32> to vector<4x1xf32>
    %32 = vector.broadcast %31 : vector<4x1xf32> to vector<4x256xf32>
    %33 = vector.broadcast %25 : vector<1x256xf32> to vector<4x256xf32>
    %34 = arith.mulf %32, %33 : vector<4x256xf32>
    %35 = arith.addf %24, %34 : vector<4x256xf32>
    %36 = vector.extract_strided_slice %9 {offsets = [2, 0], sizes = [1, 256], strides = [1, 1]} : vector<4x256xf32> to vector<1x256xf32>
    %37 = vector.extract_strided_slice %1 {offsets = [0, 2], sizes = [4, 1], strides = [1, 1]} : vector<4x4xf32> to vector<4x1xf32>
    %38 = vector.broadcast %37 : vector<4x1xf32> to vector<4x256xf32>
    %39 = vector.broadcast %36 : vector<1x256xf32> to vector<4x256xf32>
    %40 = arith.mulf %38, %39 : vector<4x256xf32>
    %41 = arith.addf %30, %40 : vector<4x256xf32>
    %42 = vector.extract_strided_slice %3 {offsets = [0, 2], sizes = [4, 1], strides = [1, 1]} : vector<4x4xf32> to vector<4x1xf32>
    %43 = vector.broadcast %42 : vector<4x1xf32> to vector<4x256xf32>
    %44 = vector.broadcast %36 : vector<1x256xf32> to vector<4x256xf32>
    %45 = arith.mulf %43, %44 : vector<4x256xf32>
    %46 = arith.addf %35, %45 : vector<4x256xf32>
    %47 = vector.extract_strided_slice %9 {offsets = [3, 0], sizes = [1, 256], strides = [1, 1]} : vector<4x256xf32> to vector<1x256xf32>
    %48 = vector.extract_strided_slice %1 {offsets = [0, 3], sizes = [4, 1], strides = [1, 1]} : vector<4x4xf32> to vector<4x1xf32>
    %49 = vector.broadcast %48 : vector<4x1xf32> to vector<4x256xf32>
    %50 = vector.broadcast %47 : vector<1x256xf32> to vector<4x256xf32>
    %51 = arith.mulf %49, %50 : vector<4x256xf32>
    %52 = arith.addf %41, %51 : vector<4x256xf32>
    %53 = vector.extract_strided_slice %3 {offsets = [0, 3], sizes = [4, 1], strides = [1, 1]} : vector<4x4xf32> to vector<4x1xf32>
    %54 = vector.broadcast %53 : vector<4x1xf32> to vector<4x256xf32>
    %55 = vector.broadcast %47 : vector<1x256xf32> to vector<4x256xf32>
    %56 = arith.mulf %54, %55 : vector<4x256xf32>
    %57 = arith.addf %46, %56 : vector<4x256xf32>
    %cst = arith.constant 5.000000e-01 : f32
    %58 = vector.broadcast %cst : f32 to vector<4x256xf32>
    %59 = arith.mulf %58, %57 : vector<4x256xf32>
    %60 = math.tanh %59 : vector<4x256xf32>
    %cst_13 = arith.constant 1.000000e+00 : f32
    %61 = vector.broadcast %cst_13 : f32 to vector<4x256xf32>
    %62 = arith.addf %60, %61 : vector<4x256xf32>
    %cst_14 = arith.constant 5.000000e-01 : f32
    %63 = vector.broadcast %cst_14 : f32 to vector<4x256xf32>
    %64 = arith.mulf %63, %62 : vector<4x256xf32>
    %65 = math.tanh %52 : vector<4x256xf32>
    %66 = arith.mulf %65, %64 : vector<4x256xf32>
    %c0_15 = arith.constant 0 : index
    %c0_16 = arith.constant 0 : index
    %c0_17 = arith.constant 0 : index
    %67 = vector.load %arg5[%c0_15, %c0_16, %c0_17] : memref<1x4x256xf32, #tpu.memory_space<vmem>>, vector<1x4x256xf32>
    %68 = vector.shape_cast %67 : vector<1x4x256xf32> to vector<4x256xf32>
    %69 = vector.shape_cast %66 : vector<4x256xf32> to vector<1x4x256xf32>
    tpu.vector_store %arg5[%c0_15, %c0_16, %c0_17], %69 {strides = array<i32>} : memref<1x4x256xf32, #tpu.memory_space<vmem>>, vector<1x4x256xf32>,
    return
  }
  func.func @transform_0(%arg0: i32, %arg1: i32) -> (i32, i32, i32) {
    %c0_i32 = arith.constant 0 : i32
    %c0_i32_0 = arith.constant 0 : i32
    return %arg0, %c0_i32, %arg1 : i32, i32, i32
  }
  func.func @transform_1(%arg0: i32, %arg1: i32) -> (i32, i32, i32) {
    %c0_i32 = arith.constant 0 : i32
    %c0_i32_0 = arith.constant 0 : i32
    %c0_i32_1 = arith.constant 0 : i32
    %c0_i32_2 = arith.constant 0 : i32
    return %c0_i32, %c0_i32_0, %c0_i32_1 : i32, i32, i32
  }
  func.func @transform_2(%arg0: i32, %arg1: i32) -> (i32, i32, i32) {
    %c0_i32 = arith.constant 0 : i32
    %c0_i32_0 = arith.constant 0 : i32
    %c0_i32_1 = arith.constant 0 : i32
    %c0_i32_2 = arith.constant 0 : i32
    return %c0_i32, %c0_i32_0, %c0_i32_1 : i32, i32, i32
  }
  func.func @transform_3(%arg0: i32, %arg1: i32) -> (i32, i32, i32) {
    %c0_i32 = arith.constant 0 : i32
    %c0_i32_0 = arith.constant 0 : i32
    return %arg0, %c0_i32, %arg1 : i32, i32, i32
  }
}

</mosaic_0001>

<llo_original>
// kernel: tpu_custom_call.1
$region0: #{tpu_custom_call.1}
  #allocation0 [shape = 'u32[]', space=smem, size = 0x4, offset = 0x4, fixed_abs, tag = 'smem constant byte address 0x4 - core index']
  #allocation1 [shape = 'u32[144,128]{1,0:T(1,128)}', space=vmem, size = 0x12000, scoped, tag = 'internal scratch']
  %s0 = inlined_call_operand.hbm [shape: f32[2,4,256], index: 0, kind: input, shape index: {}]
  %s1 = inlined_call_operand.vmem [shape: f32[2,4,4], index: 1, kind: input, shape index: {}]
  %s2 = inlined_call_operand.vmem [shape: f32[2,4,1], index: 2, kind: input, shape index: {}]
  %s3 = inlined_call_operand.hbm [shape: f32[2,4,256], index: 3, kind: output, shape index: {}]
  %s4 = sld [smem:[#allocation0]]
  $region49: #{tpu_custom_call.1} parent=0
    _
  %s6 = ssub.s32 1, %s4
  %s7 = scalar_select 0, %s6, %s4
  $region1: #{tpu_custom_call.1} parent=0
    #allocation2 [shape = 'u8[8192]{0}', space=vmem, size = 0x2000, scoped, tag = 'input window, operand 0']
    #allocation3 [shape = 's32[2]{0}', space=sflag, size = 0x8, scoped, tag = 'scoped memory for tpu_custom_call.1']
    #allocation4 [shape = 's32[2]{0}', space=sflag, size = 0x8, scoped, tag = 'scoped memory for tpu_custom_call.1']
    #allocation5 [shape = 'u8[8192]{0}', space=vmem, size = 0x2000, scoped, tag = 'output window, operand 0']
    %8 = vsyncpa [#allocation3], 0
    %s9 = scalar_lea.sflag [#allocation3], 1
    %10 = vsyncpa %s9, 0
    %11 = vsyncpa [#allocation4], 0
    %s12 = scalar_lea.sflag [#allocation4], 1
    %13 = vsyncpa %s12, 0
    loop: start=0, step=1, limit=4
    $region2: #{tpu_custom_call.1} parent=1 // loop_pre_header
      _
    $region3: #{tpu_custom_call.1} parent=1 // loop_header
      %s15 = sphi 0, %s19
      %p16 = scmp.ge.s32.totalorder %s15, 4
      %s22 = sphi 0, %s34
      %s23 = sphi 0, %s30
      %s24 = sphi 0, %s22
      %s25 = sphi 0, %s23
      %s26 = sphi 0, %s24
      %s27 = sphi 0, %s25
      %s39 = sphi 0, %s41
      %s42 = sphi 0, %s39
      %s43 = sphi 0, %s42
      %s59 = sphi 0, %s43
      %s63 = sphi 0, %s63
      %s65 = sphi 0, %s63
      %s66 = sphi 0, %s65
      %s80 = sphi 0, %s66
      %s84 = sphi 0, %s84
      %s86 = sphi 0, %s84
      %s87 = sphi 0, %s86
      %s101 = sphi 0, %s87
      %s109 = sphi 0, %s111
      %s112 = sphi 0, %s109
      %s113 = sphi 0, %s112
      %s129 = sphi 0, %s113
    $region4: #{tpu_custom_call.1} parent=1 // loop_header_branch
      %18 = sbr.rel (%p16) target = $region8
    $region5: #{tpu_custom_call.1} parent=1 // loop_body
      %s20 = ssub.s32 %s15, 1
      %s21 = ssub.s32 %s15, 2
      %s28 = sadd.s32 1, %s23
      %p29 = scmp.ge.s32.totalorder %s28, 1
      %s30 = scalar_select %p29, 0, %s28
      %s31 = sadd.s32 1, %s22
      %s32 = scalar_select %p29, %s31, %s22
      %p33 = scmp.ge.s32.totalorder %s32, 2
      %s34 = scalar_select %p33, 0, %s32
      %s35 = ssub.s32 %s22, %s34
      %s36 = ssub.s32 %s23, %s30
      %s37 = sor.u32 %s35, %s36
      %p38 = scmp.eq.s32.totalorder %s37, 0
      %s40 = sadd.s32 %s39, 1
      %s41 = scalar_select %p38, %s39, %s40
      %p44 = pneg %p38
      %p45 = scmp.eq.s32.totalorder %s15, 1
      %p46 = por %p44, %p45
      %p47 = scmp.ne.s32.totalorder %s39, %s42
      %p48 = scmp.eq.s32.totalorder %s15, 0
      %p49 = por %p47, %p48
      %p50 = scmp.ne.s32.totalorder %s39, %s42
      %p51 = scmp.eq.s32.totalorder %s20, 1
      %p52 = por %p50, %p51
      %p53 = scmp.ne.s32.totalorder %s42, %s43
      %p54 = scmp.eq.s32.totalorder %s20, 0
      %p55 = por %p53, %p54
      %p56 = scmp.ne.s32.totalorder %s42, %s43
      %p57 = scmp.eq.s32.totalorder %s21, 1
      %p58 = por %p56, %p57
      %p60 = scmp.ne.s32.totalorder %s43, %s59
      %p61 = scmp.eq.s32.totalorder %s21, 0
      %p62 = por %p60, %p61
      %s64 = sadd.s32 %s63, 1
      %p67 = scmp.eq.s32.totalorder %s15, 1
      %p68 = scmp.ne.s32.totalorder %s63, %s65
      %p69 = scmp.eq.s32.totalorder %s15, 0
      %p70 = por %p68, %p69
      %p71 = scmp.ne.s32.totalorder %s63, %s65
      %p72 = scmp.eq.s32.totalorder %s20, 1
      %p73 = por %p71, %p72
      %p74 = scmp.ne.s32.totalorder %s65, %s66
      %p75 = scmp.eq.s32.totalorder %s20, 0
      %p76 = por %p74, %p75
      %p77 = scmp.ne.s32.totalorder %s65, %s66
      %p78 = scmp.eq.s32.totalorder %s21, 1
      %p79 = por %p77, %p78
      %p81 = scmp.ne.s32.totalorder %s66, %s80
      %p82 = scmp.eq.s32.totalorder %s21, 0
      %p83 = por %p81, %p82
      %s85 = sadd.s32 %s84, 1
      %p88 = scmp.eq.s32.totalorder %s15, 1
      %p89 = scmp.ne.s32.totalorder %s84, %s86
      %p90 = scmp.eq.s32.totalorder %s15, 0
      %p91 = por %p89, %p90
      %p92 = scmp.ne.s32.totalorder %s84, %s86
      %p93 = scmp.eq.s32.totalorder %s20, 1
      %p94 = por %p92, %p93
      %p95 = scmp.ne.s32.totalorder %s86, %s87
      %p96 = scmp.eq.s32.totalorder %s20, 0
      %p97 = por %p95, %p96
      %p98 = scmp.ne.s32.totalorder %s86, %s87
      %p99 = scmp.eq.s32.totalorder %s21, 1
      %p100 = por %p98, %p99
      %p102 = scmp.ne.s32.totalorder %s87, %s101
      %p103 = scmp.eq.s32.totalorder %s21, 0
      %p104 = por %p102, %p103
      %s105 = ssub.s32 %s22, %s34
      %s106 = ssub.s32 %s23, %s30
      %s107 = sor.u32 %s105, %s106
      %p108 = scmp.eq.s32.totalorder %s107, 0
      %s110 = sadd.s32 %s109, 1
      %s111 = scalar_select %p108, %s109, %s110
      %p114 = pneg %p108
      %p115 = scmp.eq.s32.totalorder %s15, 1
      %p116 = por %p114, %p115
      %p117 = scmp.ne.s32.totalorder %s109, %s112
      %p118 = scmp.eq.s32.totalorder %s15, 0
      %p119 = por %p117, %p118
      %p120 = scmp.ne.s32.totalorder %s109, %s112
      %p121 = scmp.eq.s32.totalorder %s20, 1
      %p122 = por %p120, %p121
      %p123 = scmp.ne.s32.totalorder %s112, %s113
      %p124 = scmp.eq.s32.totalorder %s20, 0
      %p125 = por %p123, %p124
      %p126 = scmp.ne.s32.totalorder %s112, %s113
      %p127 = scmp.eq.s32.totalorder %s21, 1
      %p128 = por %p126, %p127
      %p130 = scmp.ne.s32.totalorder %s113, %s129
      %p131 = scmp.eq.s32.totalorder %s21, 0
      %p132 = por %p130, %p131
      %p133 = scmp.le.s32.totalorder 1, %s15
      %p134 = scmp.lt.s32.totalorder %s15, 3
      %p135 = pnand %p133, %p134
      %p136 = pneg %p135
      // Predicated region
      $region9: #{tpu_custom_call.1} parent=5 // pred_check
        _
      $region10: #{tpu_custom_call.1} parent=5 // pred_check_branch
        %138 = sbr.rel (%p135) target = $region12
      $region11: #{tpu_custom_call.1} parent=5 // pred_region
        %s139 = ssub.s32 %s15, 1
        // Predicated region
        $region13: #{tpu_custom_call.1} parent=11 // pred_check
          %p140 = pneg %p76
        $region14: #{tpu_custom_call.1} parent=11 // pred_check_branch
          %142 = sbr.rel (%p140) target = $region16
        $region15: #{tpu_custom_call.1} parent=11 // pred_region
          _
        $region16: #{tpu_custom_call.1} parent=11 // pred_fallthru
          _
        // Predicated region
        $region17: #{tpu_custom_call.1} parent=11 // pred_check
          %p143 = pneg %p97
        $region18: #{tpu_custom_call.1} parent=11 // pred_check_branch
          %145 = sbr.rel (%p143) target = $region20
        $region19: #{tpu_custom_call.1} parent=11 // pred_region
          _
        $region20: #{tpu_custom_call.1} parent=11 // pred_fallthru
          _
      $region12: #{tpu_custom_call.1} parent=5 // pred_fallthru
        _
      %p146 = scmp.lt.s32.totalorder %s15, 2
      // Predicated region
      $region21: #{tpu_custom_call.1} parent=5 // pred_check
        %p147 = pneg %p146
      $region22: #{tpu_custom_call.1} parent=5 // pred_check_branch
        %149 = sbr.rel (%p147) target = $region24
      $region23: #{tpu_custom_call.1} parent=5 // pred_region
        // Predicated region
        $region25: #{tpu_custom_call.1} parent=23 // pred_check
          %p150 = pneg %p49
        $region26: #{tpu_custom_call.1} parent=23 // pred_check_branch
          %152 = sbr.rel (%p150) target = $region28
        $region27: #{tpu_custom_call.1} parent=23 // pred_region
          %s153 = sand.u32 %s39, 1
          %s154 = scalar_lea.sflag [#allocation3], %s153
          %s155 = sand.u32 %s39, 1
          %s156 = smul.addr %s155, 8
          %s157 = scalar_lea.vmem [#allocation2], %s156
          %s158 = smul.u32 2, %s23
          %s160 = ssub.s32 128, 128
          %161 = vsyncadd %s154, %s160
          %s162 = smul.addr %s22, 2
          %s163 = sadd.s32 %s158, %s162
          %s164 = smul.addr %s163, 64
          %s165 = scalar_lea.hbm %s0, %s164
          %s167 = sshll.u32 %s157, 4
          %s168 = int_to_ptr.vmem [resolvable:$true] %s167
          %170 = dma.hbm_to_vmem [thread:$0]  %s165, 128, %s168, %s154
        $region28: #{tpu_custom_call.1} parent=23 // pred_fallthru
          _
      $region24: #{tpu_custom_call.1} parent=5 // pred_fallthru
        _
      %p171 = scmp.le.s32.totalorder 1, %s15
      %p172 = scmp.lt.s32.totalorder %s15, 3
      %p173 = pnand %p171, %p172
      %p174 = pneg %p173
      // Predicated region
      $region29: #{tpu_custom_call.1} parent=5 // pred_check
        _
      $region30: #{tpu_custom_call.1} parent=5 // pred_check_branch
        %176 = sbr.rel (%p173) target = $region32
      $region31: #{tpu_custom_call.1} parent=5 // pred_region
        %s177 = ssub.s32 %s15, 1
        %s178 = sand.u32 %s42, 1
        %s179 = scalar_lea.sflag [#allocation3], %s178
        %s180 = sand.u32 %s42, 1
        %s181 = smul.addr %s180, 8
        %s182 = scalar_lea.vmem [#allocation2], %s181
        // Predicated region
        $region33: #{tpu_custom_call.1} parent=31 // pred_check
          %p183 = pneg %p55
        $region34: #{tpu_custom_call.1} parent=31 // pred_check_branch
          %185 = sbr.rel (%p183) target = $region36
        $region35: #{tpu_custom_call.1} parent=31 // pred_region
          %186 = dma.done %s179, 128
        $region36: #{tpu_custom_call.1} parent=31 // pred_fallthru
          _
        %s187 = sand.u32 %s42, 1
        %s188 = scalar_lea.sflag [#allocation3], %s187
        %s189 = sand.u32 %s42, 1
        %s190 = smul.addr %s189, 8
        %s191 = scalar_lea.vmem [#allocation2], %s190
        %p192 = pneg %p55
        %p193 = pneg %p52
        %p194 = pneg %p76
        %p195 = pneg %p73
        %p196 = pneg %p97
        %p197 = pneg %p94
        %p198 = pneg %p125
        %p199 = pneg %p122
        %s200 = sand.u32 %s112, 1
        %s201 = scalar_lea.sflag [#allocation4], %s200
        %s202 = sand.u32 %s112, 1
        %s203 = smul.addr %s202, 8
        %s204 = scalar_lea.vmem [#allocation5], %s203
        %s205 = smul.u32 2, %s25
        %s206 = smul.u32 2, %s25
        %v207 = vld [vmem:[%s1] sm:$0xf]
        %s208 = scalar_lea.vmem %s1, 4
        %v209 = vld [vmem:[%s208] sm:$0xf]
        %v210 = vld [vmem:[%s2] sm:$0xf]
        %s211 = scalar_lea.vmem %s2, 4
        %v212 = vld [vmem:[%s211] sm:$0xf]
        %v213 = vld [vmem:[%s182] sm:$0xff]
        %215 = vset.pattern.permute.xlu0 0
        %216 = vperm.xlu0 %215, %v210
        %v217 = vpop.permute.xlu0 %216
        %220 = vset.pattern.permute.xlu0 0
        %221 = vperm.xlu0 %220, %v212
        %v222 = vpop.permute.xlu0 %221
        %225 = vset.pattern.permute.xlu0 0
        %226 = vperm.xlu0 %225, %v207
        %v227 = vpop.permute.xlu0 %226
        %v230 = vlaneseq
        %v231 = vshrl.u32 %v230, 7
        %v232 = vsub.s32 0, %v231
        %v233 = vrot.slane %v213, %v232
        %v234 = vlaneseq
        %v235 = vshrl.u32 %v234, 7
        %v236 = vsub.s32 4, %v235
        %v237 = vrot.slane %v213, %v236
        %v240 = vlaneseq
        %v241 = vshrl.u32 %v240, 7
        %v242 = vsub.s32 0, %v241
        %v243 = vrot.slane %v233, %v242
        %v244 = vlaneseq
        %v245 = vshrl.u32 %v244, 7
        %v246 = vsub.s32 0, %v245
        %v247 = vrot.slane %v237, %v246
        %v248 = vmul.f32 %v227, %v243
        %v249 = vmul.f32 %v227, %v247
        %v250 = vadd.f32 %v217, %v248
        %v251 = vadd.f32 %v217, %v249
        %253 = vset.pattern.permute.xlu0 0
        %254 = vperm.xlu0 %253, %v209
        %v255 = vpop.permute.xlu0 %254
        %v257 = vmul.f32 %v255, %v243
        %v258 = vmul.f32 %v255, %v247
        %v259 = vadd.f32 %v222, %v257
        %v260 = vadd.f32 %v222, %v258
        %261 = vset.pattern.permute.xlu0 1
        %262 = vperm.xlu0 %261, %v207
        %v263 = vpop.permute.xlu0 %262
        %v265 = vlaneseq
        %v266 = vshrl.u32 %v265, 7
        %v267 = vsub.s32 1, %v266
        %v268 = vrot.slane %v213, %v267
        %v269 = vlaneseq
        %v270 = vshrl.u32 %v269, 7
        %v271 = vsub.s32 5, %v270
        %v272 = vrot.slane %v213, %v271
        %v275 = vlaneseq
        %v276 = vshrl.u32 %v275, 7
        %v277 = vsub.s32 1, %v276
        %v278 = vrot.slane %v268, %v277
        %v279 = vlaneseq
        %v280 = vshrl.u32 %v279, 7
        %v281 = vsub.s32 1, %v280
        %v282 = vrot.slane %v272, %v281
        %v283 = vmul.f32 %v263, %v278
        %v284 = vmul.f32 %v263, %v282
        %v285 = vadd.f32 %v250, %v283
        %v286 = vadd.f32 %v251, %v284
        %287 = vset.pattern.permute.xlu0 1
        %288 = vperm.xlu0 %287, %v209
        %v289 = vpop.permute.xlu0 %288
        %v291 = vmul.f32 %v289, %v278
        %v292 = vmul.f32 %v289, %v282
        %v293 = vadd.f32 %v259, %v291
        %v294 = vadd.f32 %v260, %v292
        %295 = vset.pattern.permute.xlu0 2
        %296 = vperm.xlu0 %295, %v207
        %v297 = vpop.permute.xlu0 %296
        %v299 = vlaneseq
        %v300 = vshrl.u32 %v299, 7
        %v301 = vsub.s32 2, %v300
        %v302 = vrot.slane %v213, %v301
        %v303 = vlaneseq
        %v304 = vshrl.u32 %v303, 7
        %v305 = vsub.s32 6, %v304
        %v306 = vrot.slane %v213, %v305
        %v309 = vlaneseq
        %v310 = vshrl.u32 %v309, 7
        %v311 = vsub.s32 2, %v310
        %v312 = vrot.slane %v302, %v311
        %v313 = vlaneseq
        %v314 = vshrl.u32 %v313, 7
        %v315 = vsub.s32 2, %v314
        %v316 = vrot.slane %v306, %v315
        %v317 = vmul.f32 %v297, %v312
        %v318 = vmul.f32 %v297, %v316
        %v319 = vadd.f32 %v285, %v317
        %v320 = vadd.f32 %v286, %v318
        %321 = vset.pattern.permute.xlu0 2
        %322 = vperm.xlu0 %321, %v209
        %v323 = vpop.permute.xlu0 %322
        %v325 = vmul.f32 %v323, %v312
        %v326 = vmul.f32 %v323, %v316
        %v327 = vadd.f32 %v293, %v325
        %v328 = vadd.f32 %v294, %v326
        %329 = vset.pattern.permute.xlu0 3
        %330 = vperm.xlu0 %329, %v207
        %v331 = vpop.permute.xlu0 %330
        %v333 = vlaneseq
        %v334 = vshrl.u32 %v333, 7
        %v335 = vsub.s32 3, %v334
        %v336 = vrot.slane %v213, %v335
        %v337 = vlaneseq
        %v338 = vshrl.u32 %v337, 7
        %v339 = vsub.s32 7, %v338
        %v340 = vrot.slane %v213, %v339
        %v343 = vlaneseq
        %v344 = vshrl.u32 %v343, 7
        %v345 = vsub.s32 3, %v344
        %v346 = vrot.slane %v336, %v345
        %v347 = vlaneseq
        %v348 = vshrl.u32 %v347, 7
        %v349 = vsub.s32 3, %v348
        %v350 = vrot.slane %v340, %v349
        %v351 = vmul.f32 %v331, %v346
        %v352 = vmul.f32 %v331, %v350
        %v353 = vadd.f32 %v319, %v351
        %v354 = vadd.f32 %v320, %v352
        %355 = vset.pattern.permute.xlu0 3
        %356 = vperm.xlu0 %355, %v209
        %v357 = vpop.permute.xlu0 %356
        %v359 = vmul.f32 %v357, %v346
        %v360 = vmul.f32 %v357, %v350
        %v361 = vadd.f32 %v327, %v359
        %v362 = vadd.f32 %v328, %v360
        %v363 = vmul.f32 %v361, 0.5
        %v364 = vmul.f32 %v362, 0.5
        %v365 = vtanh.pop %v363
        %v366 = vtanh.pop %v364
        %v367 = vadd.f32 %v365, 1.0
        %v368 = vadd.f32 %v366, 1.0
        %v369 = vmul.f32 %v367, 0.5
        %v370 = vmul.f32 %v368, 0.5
        %v371 = vtanh.pop %v353
        %v372 = vtanh.pop %v354
        %v373 = vmul.f32 %v371, %v369
        %v374 = vmul.f32 %v372, %v370
        %v377 = vcombine.low %v373, %v374
        %379 = vst [vmem:[%s204] sm:$0xff] %v377
        %s380 = sand.u32 %s112, 1
        %s381 = scalar_lea.sflag [#allocation4], %s380
        %s382 = sand.u32 %s112, 1
        %s383 = smul.addr %s382, 8
        %s384 = scalar_lea.vmem [#allocation5], %s383
        // Predicated region
        $region37: #{tpu_custom_call.1} parent=31 // pred_check
          %p385 = pneg %p122
        $region38: #{tpu_custom_call.1} parent=31 // pred_check_branch
          %387 = sbr.rel (%p385) target = $region40
        $region39: #{tpu_custom_call.1} parent=31 // pred_region
          %s388 = smul.u32 2, %s25
          %s390 = ssub.s32 128, 128
          %391 = vsyncadd %s381, %s390
          %s392 = smul.addr %s24, 2
          %s393 = sadd.s32 %s388, %s392
          %s394 = smul.addr %s393, 64
          %s395 = scalar_lea.hbm %s3, %s394
          %s397 = sshll.u32 %s384, 4
          %s398 = int_to_ptr.vmem [resolvable:$true] %s397
          %400 = dma.vmem_to_hbm [thread:$0]  %s398, 128, %s395, %s381
        $region40: #{tpu_custom_call.1} parent=31 // pred_fallthru
          _
      $region32: #{tpu_custom_call.1} parent=5 // pred_fallthru
        _
      %p401 = scmp.le.s32.totalorder 2, %s15
      // Predicated region
      $region41: #{tpu_custom_call.1} parent=5 // pred_check
        %p402 = pneg %p401
      $region42: #{tpu_custom_call.1} parent=5 // pred_check_branch
        %404 = sbr.rel (%p402) target = $region44
      $region43: #{tpu_custom_call.1} parent=5 // pred_region
        %s405 = ssub.s32 %s15, 2
        // Predicated region
        $region45: #{tpu_custom_call.1} parent=43 // pred_check
          %p406 = pneg %p128
        $region46: #{tpu_custom_call.1} parent=43 // pred_check_branch
          %408 = sbr.rel (%p406) target = $region48
        $region47: #{tpu_custom_call.1} parent=43 // pred_region
          %s409 = sand.u32 %s113, 1
          %s410 = scalar_lea.sflag [#allocation4], %s409
          %s411 = sand.u32 %s113, 1
          %s412 = smul.addr %s411, 8
          %s413 = scalar_lea.vmem [#allocation5], %s412
          %414 = dma.done %s410, 128
        $region48: #{tpu_custom_call.1} parent=43 // pred_fallthru
          _
      $region44: #{tpu_custom_call.1} parent=5 // pred_fallthru
        _
    $region6: #{tpu_custom_call.1} parent=1 // loop_footer
      %s19 = sadd.s32 1, %s15
    $region7: #{tpu_custom_call.1} parent=1 // loop_footer_branch
      %14 = sbr.rel target = $region3
    $region8: #{tpu_custom_call.1} parent=1 // loop_exit
      _
    %415 = vsyncpa [#allocation3], 1
    %s416 = scalar_lea.sflag [#allocation3], 1
    %417 = vsyncpa %s416, 1
    %418 = vsyncpa [#allocation4], 1
    %s419 = scalar_lea.sflag [#allocation4], 1
    %420 = vsyncpa %s419, 1

</llo_original>
